<compile_context>
chip_gen: v5e
topology: v5e:2x2
jax: 0.10.0
libtpu: 0.0.40
codegen_flags: <defaults>
</compile_context>

<pallas_src>
import functools

import jax
import jax.numpy as jnp
from jax import lax
from jax.experimental import pallas as pl
from jax.experimental.pallas import tpu as pltpu


def _make_kernel(stride, th, w_out, c_in, c_out_p, r_blk):
    """Kernel for one (batch, H-tile) block."""

    def kernel(x_ref, dw_ref, b1_ref, pw_ref, b2_ref, o_ref):
        # Full-block load once; every tap window below is a *static* slice on
        # the loaded value (robust lowering, no gather / strided ref indexing).
        xv = x_ref[...].astype(jnp.float32)        # (P*r_blk, cw, c_in)
        dwv = dw_ref[...].astype(jnp.float32)      # (9, c_in), BN1 scale folded
        b1v = b1_ref[...].astype(jnp.float32)      # (1, c_in)

        # Depthwise 3x3: start the accumulator at the BN1 bias (saves a full
        # tensor add), 9 fused mul-adds on the VPU.
        acc = jnp.broadcast_to(b1v.reshape(1, 1, c_in), (th, w_out, c_in))
        for ki in range(3):
            for kj in range(3):
                p = (ki % stride) * stride + (kj % stride)   # phase index
                r0 = ki // stride
                c0 = kj // stride
                rs = p * r_blk + r0
                patch = xv[rs:rs + th, c0:c0 + w_out, :]
                acc = acc + patch * dwv[ki * 3 + kj, :]

        h = jnp.clip(acc, 0.0, 6.0)                # BN1 (folded) + ReLU6

        # Pointwise 1x1 conv on the MXU (BN2 scale folded into pw weights).
        hm = h.reshape(th * w_out, c_in)
        y = jnp.dot(hm, pw_ref[...].astype(jnp.float32),
                    preferred_element_type=jnp.float32)
        y = jnp.clip(y + b2_ref[...].astype(jnp.float32), 0.0, 6.0)

        o_ref[...] = y.reshape(th, w_out, c_out_p).astype(o_ref.dtype)

    return kernel


@functools.partial(jax.jit, static_argnames=("stride",))
def depthwise_separable_conv(x_nchw, dw_w, bn1_scale, bn1_bias,
                             pw_w, bn2_scale, bn2_bias, *, stride):
    """x_nchw: (N, Cin, H, W) float32.  Returns (N, Cout, Hout, Wout)."""
    n, c_in, h, w = x_nchw.shape
    c_out = pw_w.shape[1]
    s = stride
    h_out = (h + 2 - 3) // s + 1
    w_out = (w + 2 - 3) // s + 1
    hh = 2 // s                         # halo extent in phase-row units
    P = s * s

    # ---- fold BatchNorm scales into the conv weights (cheap, wrapper-side) ----
    dw_f = (dw_w * bn1_scale[None, None, :]).reshape(9, c_in)
    b1 = bn1_bias.reshape(1, c_in)

    c_out_p = ((c_out + 127) // 128) * 128          # lane-dense output stores
    pw_f = pw_w * bn2_scale[None, :]
    pw_p = jnp.pad(pw_f, ((0, 0), (0, c_out_p - c_out)))
    b2 = jnp.pad(bn2_bias, (0, c_out_p - c_out)).reshape(1, c_out_p)

    # ---- H-tile sizing (bounds vreg/VMEM pressure; keeps per-step work big) ----
    th = min(h_out, max(8, 512 // max(w_out, 1)))
    n_t = pl.cdiv(h_out, th)
    r_blk = th + hh                     # input rows per tile (with halo)
    cw = w_out + hh                     # input cols per phase

    # ---- NCHW -> NHWC, pad=1, de-interleave stride phases, pre-tile with halo ----
    x = jnp.transpose(x_nchw, (0, 2, 3, 1))
    xp = jnp.pad(x, ((0, 0), (1, 1), (1, 1), (0, 0)))
    r_tot = n_t * th + hh
    hp_need = s * r_tot
    wp_need = s * cw
    xp = jnp.pad(xp, ((0, 0),
                      (0, hp_need - (h + 2)),
                      (0, wp_need - (w + 2)),
                      (0, 0)))
    # split H into (row, h-phase) and W into (col, w-phase)
    xph = xp.reshape(n, r_tot, s, cw, s, c_in)
    xph = jnp.transpose(xph, (0, 2, 4, 1, 3, 5))    # (N, sh, sw, r_tot, cw, C)
    # bake halo rows into each H tile (tiny duplication, keeps blocks disjoint)
    tiles = [xph[:, :, :, i * th:i * th + r_blk, :, :] for i in range(n_t)]
    x_tiled = jnp.stack(tiles, axis=1)              # (N, n_t, sh, sw, r_blk, cw, C)
    x_tiled = x_tiled.reshape(n, n_t, P * r_blk, cw, c_in)

    kernel = _make_kernel(s, th, w_out, c_in, c_out_p, r_blk)

    out = pl.pallas_call(
        kernel,
        out_shape=jax.ShapeDtypeStruct((n, n_t, th, w_out, c_out_p), x.dtype),
        grid=(n, n_t),
        in_specs=[
            pl.BlockSpec((None, None, P * r_blk, cw, c_in),
                         lambda b, i: (b, i, 0, 0, 0)),
            pl.BlockSpec((9, c_in), lambda b, i: (0, 0)),
            pl.BlockSpec((1, c_in), lambda b, i: (0, 0)),
            pl.BlockSpec((c_in, c_out_p), lambda b, i: (0, 0)),
            pl.BlockSpec((1, c_out_p), lambda b, i: (0, 0)),
        ],
        out_specs=pl.BlockSpec((None, None, th, w_out, c_out_p),
                               lambda b, i: (b, i, 0, 0, 0)),
        compiler_params=pltpu.CompilerParams(
            dimension_semantics=("parallel", "parallel"),
            vmem_limit_bytes=48 * 1024 * 1024),   # fits v7x's 64 MiB VMEM too
    )(x_tiled, dw_f, b1, pw_p, b2)

    # drop H padding and channel padding, NHWC -> NCHW
    out = out.reshape(n, n_t * th, w_out, c_out_p)[:, :h_out, :, :c_out]
    return jnp.transpose(out, (0, 3, 1, 2))


def _fold_bn(gamma, beta, mean, var, eps=1e-5):
    scale = gamma / jnp.sqrt(var + eps)
    bias = beta - mean * scale
    return scale, bias


def _reference(x_nchw, dw_w, s1, b1, pw_w, s2, b2, stride):
    """Pure-JAX reference (NHWC), for correctness check."""
    x = jnp.transpose(x_nchw, (0, 2, 3, 1))
    c_in = x.shape[-1]
    dw_hwio = dw_w.reshape(3, 3, 1, c_in)  # depthwise: HWIO with I=1
    y = lax.conv_general_dilated(
        x, dw_hwio, window_strides=(stride, stride),
        padding=((1, 1), (1, 1)),
        dimension_numbers=("NHWC", "HWIO", "NHWC"),
        feature_group_count=c_in)
    y = jnp.clip(y * s1 + b1, 0.0, 6.0)
    y = jnp.einsum("nhwc,cd->nhwd", y, pw_w)
    y = jnp.clip(y * s2 + b2, 0.0, 6.0)
    return jnp.transpose(y, (0, 3, 1, 2))


if __name__ == "__main__":
    key = jax.random.PRNGKey(0)
    k_x, k_dw, k_pw = jax.random.split(key, 3)

    # Small shapes consistent with the module: inp=4, outp=8, stride=2.
    N, C_IN, C_OUT, H, W, STRIDE = 2, 4, 8, 16, 16, 2

    x = jax.random.normal(k_x, (N, C_IN, H, W), jnp.float32)

    # PyTorch weight shapes: depthwise (Cin,1,3,3) -> stored here as (3,3,Cin);
    # pointwise (Cout,Cin,1,1) -> stored here as (Cin,Cout).
    dw_w = 0.1 * jax.random.normal(k_dw, (3, 3, C_IN), jnp.float32)
    pw_w = 0.1 * jax.random.normal(k_pw, (C_IN, C_OUT), jnp.float32)

    # BatchNorm params at PyTorch init values (gamma=1, beta=0, mean=0, var=1).
    bn1_scale, bn1_bias = _fold_bn(jnp.ones(C_IN), jnp.zeros(C_IN),
                                   jnp.zeros(C_IN), jnp.ones(C_IN))
    bn2_scale, bn2_bias = _fold_bn(jnp.ones(C_OUT), jnp.zeros(C_OUT),
                                   jnp.zeros(C_OUT), jnp.ones(C_OUT))

    out = depthwise_separable_conv(x, dw_w, bn1_scale, bn1_bias,
                                   pw_w, bn2_scale, bn2_bias, stride=STRIDE)
    out = jax.block_until_ready(out)

    ref = _reference(x, dw_w, bn1_scale, bn1_bias, pw_w, bn2_scale, bn2_bias,
                     STRIDE)
    assert out.shape == (N, C_OUT, H // STRIDE, W // STRIDE), out.shape
    assert jnp.allclose(out, ref, rtol=1e-4, atol=1e-4), \
        float(jnp.max(jnp.abs(out - ref)))

    # Also exercise stride=1 path.
    out1 = depthwise_separable_conv(x, dw_w, bn1_scale, bn1_bias,
                                    pw_w, bn2_scale, bn2_bias, stride=1)
    out1 = jax.block_until_ready(out1)
    ref1 = _reference(x, dw_w, bn1_scale, bn1_bias, pw_w, bn2_scale, bn2_bias, 1)
    assert out1.shape == (N, C_OUT, H, W), out1.shape
    assert jnp.allclose(out1, ref1, rtol=1e-4, atol=1e-4), \
        float(jnp.max(jnp.abs(out1 - ref1)))

    print("KERNEL_OK")
</pallas_src>

<mosaic_0001>
module attributes {stable_mosaic.version = 11 : i64} {
  func.func @kernel(%arg0: i32, %arg1: i32, %arg2: memref<1x1x36x9x4xf32, #tpu.memory_space<vmem>>, %arg3: memref<9x4xf32, #tpu.memory_space<vmem>>, %arg4: memref<1x4xf32, #tpu.memory_space<vmem>>, %arg5: memref<4x128xf32, #tpu.memory_space<vmem>>, %arg6: memref<1x128xf32, #tpu.memory_space<vmem>>, %arg7: memref<1x1x8x8x128xf32, #tpu.memory_space<vmem>>) attributes {dimension_semantics = [#tpu.dimension_semantics<parallel>, #tpu.dimension_semantics<parallel>], iteration_bounds = array<i64: 2, 1>, scalar_prefetch = 0 : i64, scratch_operands = 0 : i64, tpu.core_type = #tpu.core_type<tc>, window_params = [{transform_indices = @transform_0, window_bounds = array<i64: 1, 1, 36, 9, 4>}, {pipeline_mode = #tpu.pipeline_mode<synchronous>, transform_indices = @transform_1, window_bounds = array<i64: 9, 4>}, {pipeline_mode = #tpu.pipeline_mode<synchronous>, transform_indices = @transform_2, window_bounds = array<i64: 1, 4>}, {pipeline_mode = #tpu.pipeline_mode<synchronous>, transform_indices = @transform_3, window_bounds = array<i64: 4, 128>}, {pipeline_mode = #tpu.pipeline_mode<synchronous>, transform_indices = @transform_4, window_bounds = array<i64: 1, 128>}, {transform_indices = @transform_5, window_bounds = array<i64: 1, 1, 8, 8, 128>}]} {
    %c0 = arith.constant 0 : index
    %c0_0 = arith.constant 0 : index
    %c0_1 = arith.constant 0 : index
    %c0_2 = arith.constant 0 : index
    %c0_3 = arith.constant 0 : index
    %0 = vector.load %arg2[%c0, %c0_0, %c0_1, %c0_2, %c0_3] : memref<1x1x36x9x4xf32, #tpu.memory_space<vmem>>, vector<1x1x36x9x4xf32>
    %1 = vector.shape_cast %0 : vector<1x1x36x9x4xf32> to vector<36x9x4xf32>
    %c0_4 = arith.constant 0 : index
    %c0_5 = arith.constant 0 : index
    %2 = vector.load %arg3[%c0_4, %c0_5] : memref<9x4xf32, #tpu.memory_space<vmem>>, vector<9x4xf32>
    %c0_6 = arith.constant 0 : index
    %c0_7 = arith.constant 0 : index
    %3 = vector.load %arg4[%c0_6, %c0_7] : memref<1x4xf32, #tpu.memory_space<vmem>>, vector<1x4xf32>
    %4 = vector.shape_cast %3 : vector<1x4xf32> to vector<1x1x4xf32>
    %5 = vector.shape_cast %4 : vector<1x1x4xf32> to vector<1x1x4xf32>
    %6 = vector.broadcast %5 : vector<1x1x4xf32> to vector<8x8x4xf32>
    %7 = vector.extract_strided_slice %1 {offsets = [0, 0, 0], sizes = [8, 8, 4], strides = [1, 1, 1]} : vector<36x9x4xf32> to vector<8x8x4xf32>
    %8 = vector.extract_strided_slice %2 {offsets = [0, 0], sizes = [1, 4], strides = [1, 1]} : vector<9x4xf32> to vector<1x4xf32>
    %9 = vector.shape_cast %8 : vector<1x4xf32> to vector<4xf32>
    %10 = vector.shape_cast %9 : vector<4xf32> to vector<1x1x4xf32>
    %11 = vector.broadcast %10 : vector<1x1x4xf32> to vector<8x8x4xf32>
    %12 = arith.mulf %7, %11 : vector<8x8x4xf32>
    %13 = arith.addf %6, %12 : vector<8x8x4xf32>
    %14 = vector.extract_strided_slice %1 {offsets = [9, 0, 0], sizes = [8, 8, 4], strides = [1, 1, 1]} : vector<36x9x4xf32> to vector<8x8x4xf32>
    %15 = vector.extract_strided_slice %2 {offsets = [1, 0], sizes = [1, 4], strides = [1, 1]} : vector<9x4xf32> to vector<1x4xf32>
    %16 = vector.shape_cast %15 : vector<1x4xf32> to vector<4xf32>
    %17 = vector.shape_cast %16 : vector<4xf32> to vector<1x1x4xf32>
    %18 = vector.broadcast %17 : vector<1x1x4xf32> to vector<8x8x4xf32>
    %19 = arith.mulf %14, %18 : vector<8x8x4xf32>
    %20 = arith.addf %13, %19 : vector<8x8x4xf32>
    %21 = vector.extract_strided_slice %1 {offsets = [0, 1, 0], sizes = [8, 8, 4], strides = [1, 1, 1]} : vector<36x9x4xf32> to vector<8x8x4xf32>
    %22 = vector.extract_strided_slice %2 {offsets = [2, 0], sizes = [1, 4], strides = [1, 1]} : vector<9x4xf32> to vector<1x4xf32>
    %23 = vector.shape_cast %22 : vector<1x4xf32> to vector<4xf32>
    %24 = vector.shape_cast %23 : vector<4xf32> to vector<1x1x4xf32>
    %25 = vector.broadcast %24 : vector<1x1x4xf32> to vector<8x8x4xf32>
    %26 = arith.mulf %21, %25 : vector<8x8x4xf32>
    %27 = arith.addf %20, %26 : vector<8x8x4xf32>
    %28 = vector.extract_strided_slice %1 {offsets = [18, 0, 0], sizes = [8, 8, 4], strides = [1, 1, 1]} : vector<36x9x4xf32> to vector<8x8x4xf32>
    %29 = vector.extract_strided_slice %2 {offsets = [3, 0], sizes = [1, 4], strides = [1, 1]} : vector<9x4xf32> to vector<1x4xf32>
    %30 = vector.shape_cast %29 : vector<1x4xf32> to vector<4xf32>
    %31 = vector.shape_cast %30 : vector<4xf32> to vector<1x1x4xf32>
    %32 = vector.broadcast %31 : vector<1x1x4xf32> to vector<8x8x4xf32>
    %33 = arith.mulf %28, %32 : vector<8x8x4xf32>
    %34 = arith.addf %27, %33 : vector<8x8x4xf32>
    %35 = vector.extract_strided_slice %1 {offsets = [27, 0, 0], sizes = [8, 8, 4], strides = [1, 1, 1]} : vector<36x9x4xf32> to vector<8x8x4xf32>
    %36 = vector.extract_strided_slice %2 {offsets = [4, 0], sizes = [1, 4], strides = [1, 1]} : vector<9x4xf32> to vector<1x4xf32>
    %37 = vector.shape_cast %36 : vector<1x4xf32> to vector<4xf32>
    %38 = vector.shape_cast %37 : vector<4xf32> to vector<1x1x4xf32>
    %39 = vector.broadcast %38 : vector<1x1x4xf32> to vector<8x8x4xf32>
    %40 = arith.mulf %35, %39 : vector<8x8x4xf32>
    %41 = arith.addf %34, %40 : vector<8x8x4xf32>
    %42 = vector.extract_strided_slice %1 {offsets = [18, 1, 0], sizes = [8, 8, 4], strides = [1, 1, 1]} : vector<36x9x4xf32> to vector<8x8x4xf32>
    %43 = vector.extract_strided_slice %2 {offsets = [5, 0], sizes = [1, 4], strides = [1, 1]} : vector<9x4xf32> to vector<1x4xf32>
    %44 = vector.shape_cast %43 : vector<1x4xf32> to vector<4xf32>
    %45 = vector.shape_cast %44 : vector<4xf32> to vector<1x1x4xf32>
    %46 = vector.broadcast %45 : vector<1x1x4xf32> to vector<8x8x4xf32>
    %47 = arith.mulf %42, %46 : vector<8x8x4xf32>
    %48 = arith.addf %41, %47 : vector<8x8x4xf32>
    %49 = vector.extract_strided_slice %1 {offsets = [1, 0, 0], sizes = [8, 8, 4], strides = [1, 1, 1]} : vector<36x9x4xf32> to vector<8x8x4xf32>
    %50 = vector.extract_strided_slice %2 {offsets = [6, 0], sizes = [1, 4], strides = [1, 1]} : vector<9x4xf32> to vector<1x4xf32>
    %51 = vector.shape_cast %50 : vector<1x4xf32> to vector<4xf32>
    %52 = vector.shape_cast %51 : vector<4xf32> to vector<1x1x4xf32>
    %53 = vector.broadcast %52 : vector<1x1x4xf32> to vector<8x8x4xf32>
    %54 = arith.mulf %49, %53 : vector<8x8x4xf32>
    %55 = arith.addf %48, %54 : vector<8x8x4xf32>
    %56 = vector.extract_strided_slice %1 {offsets = [10, 0, 0], sizes = [8, 8, 4], strides = [1, 1, 1]} : vector<36x9x4xf32> to vector<8x8x4xf32>
    %57 = vector.extract_strided_slice %2 {offsets = [7, 0], sizes = [1, 4], strides = [1, 1]} : vector<9x4xf32> to vector<1x4xf32>
    %58 = vector.shape_cast %57 : vector<1x4xf32> to vector<4xf32>
    %59 = vector.shape_cast %58 : vector<4xf32> to vector<1x1x4xf32>
    %60 = vector.broadcast %59 : vector<1x1x4xf32> to vector<8x8x4xf32>
    %61 = arith.mulf %56, %60 : vector<8x8x4xf32>
    %62 = arith.addf %55, %61 : vector<8x8x4xf32>
    %63 = vector.extract_strided_slice %1 {offsets = [1, 1, 0], sizes = [8, 8, 4], strides = [1, 1, 1]} : vector<36x9x4xf32> to vector<8x8x4xf32>
    %64 = vector.extract_strided_slice %2 {offsets = [8, 0], sizes = [1, 4], strides = [1, 1]} : vector<9x4xf32> to vector<1x4xf32>
    %65 = vector.shape_cast %64 : vector<1x4xf32> to vector<4xf32>
    %66 = vector.shape_cast %65 : vector<4xf32> to vector<1x1x4xf32>
    %67 = vector.broadcast %66 : vector<1x1x4xf32> to vector<8x8x4xf32>
    %68 = arith.mulf %63, %67 : vector<8x8x4xf32>
    %69 = arith.addf %62, %68 : vector<8x8x4xf32>
    %cst = arith.constant 0.000000e+00 : f32
    %cst_8 = arith.constant 6.000000e+00 : f32
    %70 = vector.broadcast %cst : f32 to vector<8x8x4xf32>
    %71 = arith.maximumf %70, %69 : vector<8x8x4xf32>
    %72 = vector.broadcast %cst_8 : f32 to vector<8x8x4xf32>
    %73 = arith.minimumf %72, %71 : vector<8x8x4xf32>
    %74 = vector.shape_cast %73 : vector<8x8x4xf32> to vector<64x4xf32>
    %c0_9 = arith.constant 0 : index
    %c0_10 = arith.constant 0 : index
    %75 = vector.load %arg5[%c0_9, %c0_10] : memref<4x128xf32, #tpu.memory_space<vmem>>, vector<4x128xf32>
    %cst_11 = arith.constant dense<0.000000e+00> : vector<64x128xf32>
    %76 = tpu.matmul %74, %75, %cst_11 {dimension_numbers = #tpu.dot_dimension_numbers<[1], [0], [0], [1], [0, 0, 1, 1], [], []>} : vector<64x4xf32>, vector<4x128xf32>, vector<64x128xf32> -> vector<64x128xf32>
    %c0_12 = arith.constant 0 : index
    %c0_13 = arith.constant 0 : index
    %77 = vector.load %arg6[%c0_12, %c0_13] : memref<1x128xf32, #tpu.memory_space<vmem>>, vector<1x128xf32>
    %78 = vector.broadcast %77 : vector<1x128xf32> to vector<64x128xf32>
    %79 = arith.addf %76, %78 : vector<64x128xf32>
    %cst_14 = arith.constant 0.000000e+00 : f32
    %cst_15 = arith.constant 6.000000e+00 : f32
    %80 = vector.broadcast %cst_14 : f32 to vector<64x128xf32>
    %81 = arith.maximumf %80, %79 : vector<64x128xf32>
    %82 = vector.broadcast %cst_15 : f32 to vector<64x128xf32>
    %83 = arith.minimumf %82, %81 : vector<64x128xf32>
    %84 = vector.shape_cast %83 : vector<64x128xf32> to vector<8x8x128xf32>
    %c0_16 = arith.constant 0 : index
    %c0_17 = arith.constant 0 : index
    %c0_18 = arith.constant 0 : index
    %c0_19 = arith.constant 0 : index
    %c0_20 = arith.constant 0 : index
    %85 = vector.load %arg7[%c0_16, %c0_17, %c0_18, %c0_19, %c0_20] : memref<1x1x8x8x128xf32, #tpu.memory_space<vmem>>, vector<1x1x8x8x128xf32>
    %86 = vector.shape_cast %85 : vector<1x1x8x8x128xf32> to vector<8x8x128xf32>
    %87 = vector.shape_cast %84 : vector<8x8x128xf32> to vector<1x1x8x8x128xf32>
    tpu.vector_store %arg7[%c0_16, %c0_17, %c0_18, %c0_19, %c0_20], %87 {strides = array<i32>} : memref<1x1x8x8x128xf32, #tpu.memory_space<vmem>>, vector<1x1x8x8x128xf32>,
    return
  }
  func.func @transform_0(%arg0: i32, %arg1: i32) -> (i32, i32, i32, i32, i32) {
    %c0_i32 = arith.constant 0 : i32
    %c0_i32_0 = arith.constant 0 : i32
    %c0_i32_1 = arith.constant 0 : i32
    %c0_i32_2 = arith.constant 0 : i32
    return %arg0, %arg1, %c0_i32, %c0_i32_0, %c0_i32_1 : i32, i32, i32, i32, i32
  }
  func.func @transform_1(%arg0: i32, %arg1: i32) -> (i32, i32) {
    %c0_i32 = arith.constant 0 : i32
    %c0_i32_0 = arith.constant 0 : i32
    %c0_i32_1 = arith.constant 0 : i32
    return %c0_i32, %c0_i32_0 : i32, i32
  }
  func.func @transform_2(%arg0: i32, %arg1: i32) -> (i32, i32) {
    %c0_i32 = arith.constant 0 : i32
    %c0_i32_0 = arith.constant 0 : i32
    %c0_i32_1 = arith.constant 0 : i32
    return %c0_i32, %c0_i32_0 : i32, i32
  }
  func.func @transform_3(%arg0: i32, %arg1: i32) -> (i32, i32) {
    %c0_i32 = arith.constant 0 : i32
    %c0_i32_0 = arith.constant 0 : i32
    %c0_i32_1 = arith.constant 0 : i32
    return %c0_i32, %c0_i32_0 : i32, i32
  }
  func.func @transform_4(%arg0: i32, %arg1: i32) -> (i32, i32) {
    %c0_i32 = arith.constant 0 : i32
    %c0_i32_0 = arith.constant 0 : i32
    %c0_i32_1 = arith.constant 0 : i32
    return %c0_i32, %c0_i32_0 : i32, i32
  }
  func.func @transform_5(%arg0: i32, %arg1: i32) -> (i32, i32, i32, i32, i32) {
    %c0_i32 = arith.constant 0 : i32
    %c0_i32_0 = arith.constant 0 : i32
    %c0_i32_1 = arith.constant 0 : i32
    %c0_i32_2 = arith.constant 0 : i32
    return %arg0, %arg1, %c0_i32, %c0_i32_0, %c0_i32_1 : i32, i32, i32, i32, i32
  }
}

</mosaic_0001>

<llo_original>
// kernel: depthwise_separable_conv.1
$region0: #{depthwise_separable_conv.1}
  #allocation0 [shape = 'u32[]', space=smem, size = 0x4, offset = 0x4, fixed_abs, tag = 'smem constant byte address 0x4 - core index']
  #allocation1 [shape = 'u32[72,128]{1,0:T(1,128)}', space=vmem, size = 0x9000, scoped, tag = 'internal scratch']
  %s0 = inlined_call_operand.vmem [shape: f32[2,1,36,9,4], index: 0, kind: input, shape index: {}]
  %s1 = inlined_call_operand.vmem [shape: f32[9,4], index: 1, kind: input, shape index: {}]
  %s2 = inlined_call_operand.vmem [shape: f32[1,4], index: 2, kind: input, shape index: {}]
  %s3 = inlined_call_operand.vmem [shape: f32[4,128], index: 3, kind: input, shape index: {}]
  %s4 = inlined_call_operand.vmem [shape: f32[1,128], index: 4, kind: input, shape index: {}]
  %s5 = inlined_call_operand.vmem [shape: f32[2,1,8,8,128], index: 5, kind: output, shape index: {}]
  %s6 = sld [smem:[#allocation0]]
  $region53: #{depthwise_separable_conv.1} parent=0
    _
  %s8 = ssub.s32 1, %s6
  %s9 = scalar_select 0, %s8, %s6
  loop: start=0, step=1, limit=4
  $region2: #{depthwise_separable_conv.1} parent=0 // loop_pre_header
    _
  $region3: #{depthwise_separable_conv.1} parent=0 // loop_header
    %s11 = sphi 0, %s15
    %p12 = scmp.ge.s32.totalorder %s11, 4
    %s18 = sphi 0, %s30
    %s19 = sphi 0, %s26
    %s20 = sphi 0, %s18
    %s21 = sphi 0, %s19
    %s22 = sphi 0, %s20
    %s23 = sphi 0, %s21
    %s35 = sphi 0, %s37
    %s38 = sphi 0, %s35
    %s39 = sphi 0, %s38
    %s55 = sphi 0, %s39
    %s59 = sphi 0, %s59
    %s61 = sphi 0, %s59
    %s62 = sphi 0, %s61
    %s76 = sphi 0, %s62
    %s80 = sphi 0, %s80
    %s82 = sphi 0, %s80
    %s83 = sphi 0, %s82
    %s97 = sphi 0, %s83
    %s101 = sphi 0, %s101
    %s103 = sphi 0, %s101
    %s104 = sphi 0, %s103
    %s118 = sphi 0, %s104
    %s122 = sphi 0, %s122
    %s124 = sphi 0, %s122
    %s125 = sphi 0, %s124
    %s139 = sphi 0, %s125
    %s147 = sphi 0, %s149
    %s150 = sphi 0, %s147
    %s151 = sphi 0, %s150
    %s167 = sphi 0, %s151
  $region4: #{depthwise_separable_conv.1} parent=0 // loop_header_branch
    %14 = sbr.rel (%p12) target = $region8
  $region5: #{depthwise_separable_conv.1} parent=0 // loop_body
    %s16 = ssub.s32 %s11, 1
    %s17 = ssub.s32 %s11, 2
    %s24 = sadd.s32 1, %s19
    %p25 = scmp.ge.s32.totalorder %s24, 1
    %s26 = scalar_select %p25, 0, %s24
    %s27 = sadd.s32 1, %s18
    %s28 = scalar_select %p25, %s27, %s18
    %p29 = scmp.ge.s32.totalorder %s28, 2
    %s30 = scalar_select %p29, 0, %s28
    %s31 = ssub.s32 %s18, %s30
    %s32 = ssub.s32 %s19, %s26
    %s33 = sor.u32 %s31, %s32
    %p34 = scmp.eq.s32.totalorder %s33, 0
    %s36 = sadd.s32 %s35, 1
    %s37 = scalar_select %p34, %s35, %s36
    %p40 = pneg %p34
    %p41 = scmp.eq.s32.totalorder %s11, 1
    %p42 = por %p40, %p41
    %p43 = scmp.ne.s32.totalorder %s35, %s38
    %p44 = scmp.eq.s32.totalorder %s11, 0
    %p45 = por %p43, %p44
    %p46 = scmp.ne.s32.totalorder %s35, %s38
    %p47 = scmp.eq.s32.totalorder %s16, 1
    %p48 = por %p46, %p47
    %p49 = scmp.ne.s32.totalorder %s38, %s39
    %p50 = scmp.eq.s32.totalorder %s16, 0
    %p51 = por %p49, %p50
    %p52 = scmp.ne.s32.totalorder %s38, %s39
    %p53 = scmp.eq.s32.totalorder %s17, 1
    %p54 = por %p52, %p53
    %p56 = scmp.ne.s32.totalorder %s39, %s55
    %p57 = scmp.eq.s32.totalorder %s17, 0
    %p58 = por %p56, %p57
    %s60 = sadd.s32 %s59, 1
    %p63 = scmp.eq.s32.totalorder %s11, 1
    %p64 = scmp.ne.s32.totalorder %s59, %s61
    %p65 = scmp.eq.s32.totalorder %s11, 0
    %p66 = por %p64, %p65
    %p67 = scmp.ne.s32.totalorder %s59, %s61
    %p68 = scmp.eq.s32.totalorder %s16, 1
    %p69 = por %p67, %p68
    %p70 = scmp.ne.s32.totalorder %s61, %s62
    %p71 = scmp.eq.s32.totalorder %s16, 0
    %p72 = por %p70, %p71
    %p73 = scmp.ne.s32.totalorder %s61, %s62
    %p74 = scmp.eq.s32.totalorder %s17, 1
    %p75 = por %p73, %p74
    %p77 = scmp.ne.s32.totalorder %s62, %s76
    %p78 = scmp.eq.s32.totalorder %s17, 0
    %p79 = por %p77, %p78
    %s81 = sadd.s32 %s80, 1
    %p84 = scmp.eq.s32.totalorder %s11, 1
    %p85 = scmp.ne.s32.totalorder %s80, %s82
    %p86 = scmp.eq.s32.totalorder %s11, 0
    %p87 = por %p85, %p86
    %p88 = scmp.ne.s32.totalorder %s80, %s82
    %p89 = scmp.eq.s32.totalorder %s16, 1
    %p90 = por %p88, %p89
    %p91 = scmp.ne.s32.totalorder %s82, %s83
    %p92 = scmp.eq.s32.totalorder %s16, 0
    %p93 = por %p91, %p92
    %p94 = scmp.ne.s32.totalorder %s82, %s83
    %p95 = scmp.eq.s32.totalorder %s17, 1
    %p96 = por %p94, %p95
    %p98 = scmp.ne.s32.totalorder %s83, %s97
    %p99 = scmp.eq.s32.totalorder %s17, 0
    %p100 = por %p98, %p99
    %s102 = sadd.s32 %s101, 1
    %p105 = scmp.eq.s32.totalorder %s11, 1
    %p106 = scmp.ne.s32.totalorder %s101, %s103
    %p107 = scmp.eq.s32.totalorder %s11, 0
    %p108 = por %p106, %p107
    %p109 = scmp.ne.s32.totalorder %s101, %s103
    %p110 = scmp.eq.s32.totalorder %s16, 1
    %p111 = por %p109, %p110
    %p112 = scmp.ne.s32.totalorder %s103, %s104
    %p113 = scmp.eq.s32.totalorder %s16, 0
    %p114 = por %p112, %p113
    %p115 = scmp.ne.s32.totalorder %s103, %s104
    %p116 = scmp.eq.s32.totalorder %s17, 1
    %p117 = por %p115, %p116
    %p119 = scmp.ne.s32.totalorder %s104, %s118
    %p120 = scmp.eq.s32.totalorder %s17, 0
    %p121 = por %p119, %p120
    %s123 = sadd.s32 %s122, 1
    %p126 = scmp.eq.s32.totalorder %s11, 1
    %p127 = scmp.ne.s32.totalorder %s122, %s124
    %p128 = scmp.eq.s32.totalorder %s11, 0
    %p129 = por %p127, %p128
    %p130 = scmp.ne.s32.totalorder %s122, %s124
    %p131 = scmp.eq.s32.totalorder %s16, 1
    %p132 = por %p130, %p131
    %p133 = scmp.ne.s32.totalorder %s124, %s125
    %p134 = scmp.eq.s32.totalorder %s16, 0
    %p135 = por %p133, %p134
    %p136 = scmp.ne.s32.totalorder %s124, %s125
    %p137 = scmp.eq.s32.totalorder %s17, 1
    %p138 = por %p136, %p137
    %p140 = scmp.ne.s32.totalorder %s125, %s139
    %p141 = scmp.eq.s32.totalorder %s17, 0
    %p142 = por %p140, %p141
    %s143 = ssub.s32 %s18, %s30
    %s144 = ssub.s32 %s19, %s26
    %s145 = sor.u32 %s143, %s144
    %p146 = scmp.eq.s32.totalorder %s145, 0
    %s148 = sadd.s32 %s147, 1
    %s149 = scalar_select %p146, %s147, %s148
    %p152 = pneg %p146
    %p153 = scmp.eq.s32.totalorder %s11, 1
    %p154 = por %p152, %p153
    %p155 = scmp.ne.s32.totalorder %s147, %s150
    %p156 = scmp.eq.s32.totalorder %s11, 0
    %p157 = por %p155, %p156
    %p158 = scmp.ne.s32.totalorder %s147, %s150
    %p159 = scmp.eq.s32.totalorder %s16, 1
    %p160 = por %p158, %p159
    %p161 = scmp.ne.s32.totalorder %s150, %s151
    %p162 = scmp.eq.s32.totalorder %s16, 0
    %p163 = por %p161, %p162
    %p164 = scmp.ne.s32.totalorder %s150, %s151
    %p165 = scmp.eq.s32.totalorder %s17, 1
    %p166 = por %p164, %p165
    %p168 = scmp.ne.s32.totalorder %s151, %s167
    %p169 = scmp.eq.s32.totalorder %s17, 0
    %p170 = por %p168, %p169
    %p171 = scmp.le.s32.totalorder 1, %s11
    %p172 = scmp.lt.s32.totalorder %s11, 3
    %p173 = pnand %p171, %p172
    %p174 = pneg %p173
    // Predicated region
    $region9: #{depthwise_separable_conv.1} parent=5 // pred_check
      _
    $region10: #{depthwise_separable_conv.1} parent=5 // pred_check_branch
      %176 = sbr.rel (%p173) target = $region12
    $region11: #{depthwise_separable_conv.1} parent=5 // pred_region
      %s177 = ssub.s32 %s11, 1
      // Predicated region
      $region13: #{depthwise_separable_conv.1} parent=11 // pred_check
        %p178 = pneg %p72
      $region14: #{depthwise_separable_conv.1} parent=11 // pred_check_branch
        %180 = sbr.rel (%p178) target = $region16
      $region15: #{depthwise_separable_conv.1} parent=11 // pred_region
        _
      $region16: #{depthwise_separable_conv.1} parent=11 // pred_fallthru
        _
      // Predicated region
      $region17: #{depthwise_separable_conv.1} parent=11 // pred_check
        %p181 = pneg %p93
      $region18: #{depthwise_separable_conv.1} parent=11 // pred_check_branch
        %183 = sbr.rel (%p181) target = $region20
      $region19: #{depthwise_separable_conv.1} parent=11 // pred_region
        _
      $region20: #{depthwise_separable_conv.1} parent=11 // pred_fallthru
        _
      // Predicated region
      $region21: #{depthwise_separable_conv.1} parent=11 // pred_check
        %p184 = pneg %p114
      $region22: #{depthwise_separable_conv.1} parent=11 // pred_check_branch
        %186 = sbr.rel (%p184) target = $region24
      $region23: #{depthwise_separable_conv.1} parent=11 // pred_region
        _
      $region24: #{depthwise_separable_conv.1} parent=11 // pred_fallthru
        _
      // Predicated region
      $region25: #{depthwise_separable_conv.1} parent=11 // pred_check
        %p187 = pneg %p135
      $region26: #{depthwise_separable_conv.1} parent=11 // pred_check_branch
        %189 = sbr.rel (%p187) target = $region28
      $region27: #{depthwise_separable_conv.1} parent=11 // pred_region
        _
      $region28: #{depthwise_separable_conv.1} parent=11 // pred_fallthru
        _
    $region12: #{depthwise_separable_conv.1} parent=5 // pred_fallthru
      _
    %p190 = scmp.lt.s32.totalorder %s11, 2
    // Predicated region
    $region29: #{depthwise_separable_conv.1} parent=5 // pred_check
      %p191 = pneg %p190
    $region30: #{depthwise_separable_conv.1} parent=5 // pred_check_branch
      %193 = sbr.rel (%p191) target = $region32
    $region31: #{depthwise_separable_conv.1} parent=5 // pred_region
      // Predicated region
      $region33: #{depthwise_separable_conv.1} parent=31 // pred_check
        %p194 = pneg %p45
      $region34: #{depthwise_separable_conv.1} parent=31 // pred_check_branch
        %196 = sbr.rel (%p194) target = $region36
      $region35: #{depthwise_separable_conv.1} parent=31 // pred_region
        %p197 = scmp.lt.s32.totalorder %s18, 1
        %s198 = scalar_select %p197, %s18, 1
        %p199 = scmp.lt.s32.totalorder %s19, 0
        %s200 = scalar_select %p199, %s19, 0
        %s201 = smul.addr %s200, 72
        %s202 = smul.addr %s198, 72
        %s203 = sadd.s32 %s201, %s202
        %s204 = smul.addr %s203, 8
        %s205 = scalar_lea.vmem %s0, %s204
      $region36: #{depthwise_separable_conv.1} parent=31 // pred_fallthru
        _
    $region32: #{depthwise_separable_conv.1} parent=5 // pred_fallthru
      _
    %p206 = scmp.le.s32.totalorder 1, %s11
    %p207 = scmp.lt.s32.totalorder %s11, 3
    %p208 = pnand %p206, %p207
    %p209 = pneg %p208
    // Predicated region
    $region37: #{depthwise_separable_conv.1} parent=5 // pred_check
      _
    $region38: #{depthwise_separable_conv.1} parent=5 // pred_check_branch
      %211 = sbr.rel (%p208) target = $region40
    $region39: #{depthwise_separable_conv.1} parent=5 // pred_region
      %s212 = ssub.s32 %s11, 1
      %p213 = scmp.lt.s32.totalorder %s20, 1
      %s214 = scalar_select %p213, %s20, 1
      %p215 = scmp.lt.s32.totalorder %s21, 0
      %s216 = scalar_select %p215, %s21, 0
      %s217 = smul.addr %s216, 72
      %s218 = smul.addr %s214, 72
      %s219 = sadd.s32 %s217, %s218
      %s220 = smul.addr %s219, 8
      %s221 = scalar_lea.vmem %s0, %s220
      %p222 = pneg %p51
      %p223 = pneg %p48
      %p224 = pneg %p72
      %p225 = pneg %p69
      %p226 = pneg %p93
      %p227 = pneg %p90
      %p228 = pneg %p114
      %p229 = pneg %p111
      %p230 = pneg %p135
      %p231 = pneg %p132
      %p232 = pneg %p163
      %p233 = pneg %p160
      %p234 = scmp.lt.s32.totalorder %s20, 1
      %s235 = scalar_select %p234, %s20, 1
      %p236 = scmp.lt.s32.totalorder %s21, 0
      %s237 = scalar_select %p236, %s21, 0
      %s238 = smul.addr %s237, 8
      %s239 = smul.addr %s235, 8
      %s240 = sadd.s32 %s238, %s239
      %s241 = smul.addr %s240, 8
      %s242 = scalar_lea.vmem %s5, %s241
      %p243 = scmp.lt.s32.totalorder %s20, 1
      %s244 = scalar_select %p243, %s20, 1
      %p245 = scmp.lt.s32.totalorder %s21, 0
      %s246 = scalar_select %p245, %s21, 0
      %s247 = smul.addr %s246, 72
      %s248 = smul.addr %s244, 72
      %s249 = sadd.s32 %s247, %s248
      %s250 = smul.addr %s249, 8
      %s251 = scalar_lea.vmem %s0, %s250
      %p252 = scmp.lt.s32.totalorder %s20, 1
      %s253 = scalar_select %p252, %s20, 1
      %p254 = scmp.lt.s32.totalorder %s21, 0
      %s255 = scalar_select %p254, %s21, 0
      %s256 = smul.addr %s255, 8
      %s257 = smul.addr %s253, 8
      %s258 = sadd.s32 %s256, %s257
      %s259 = smul.addr %s258, 8
      %s260 = scalar_lea.vmem %s5, %s259
      %v261 = vld [vmem:[%s251] sm:$0xff]
      %v262 = vld [vmem:[%s251 + $0x8] sm:$0x1]
      %v263 = vld [vmem:[%s251 + $0x10] sm:$0xff]
      %v264 = vld [vmem:[%s251 + $0x18] sm:$0x1]
      %v265 = vld [vmem:[%s251 + $0x20] sm:$0xff]
      %v266 = vld [vmem:[%s251 + $0x28] sm:$0x1]
      %v267 = vld [vmem:[%s251 + $0x30] sm:$0xff]
      %v268 = vld [vmem:[%s251 + $0x38] sm:$0x1]
      %v269 = vld [vmem:[%s251 + $0x40] sm:$0xff]
      %v270 = vld [vmem:[%s251 + $0x48] sm:$0x1]
      %v271 = vld [vmem:[%s251 + $0x50] sm:$0xff]
      %v272 = vld [vmem:[%s251 + $0x58] sm:$0x1]
      %v273 = vld [vmem:[%s251 + $0x60] sm:$0xff]
      %v274 = vld [vmem:[%s251 + $0x68] sm:$0x1]
      %v275 = vld [vmem:[%s251 + $0x70] sm:$0xff]
      %v276 = vld [vmem:[%s251 + $0x78] sm:$0x1]
      %v277 = vld [vmem:[%s251 + $0x80] sm:$0xff]
      %v278 = vld [vmem:[%s251 + $0x88] sm:$0x1]
      %v279 = vld [vmem:[%s251 + $0x90] sm:$0xff]
      %v280 = vld [vmem:[%s251 + $0xa0] sm:$0xff]
      %v281 = vld [vmem:[%s251 + $0xb0] sm:$0xff]
      %v282 = vld [vmem:[%s251 + $0xc0] sm:$0xff]
      %v283 = vld [vmem:[%s251 + $0xd0] sm:$0xff]
      %v284 = vld [vmem:[%s251 + $0xe0] sm:$0xff]
      %v285 = vld [vmem:[%s251 + $0xf0] sm:$0xff]
      %v286 = vld [vmem:[%s251 + $0x100] sm:$0xff]
      %v287 = vld [vmem:[%s251 + $0x110] sm:$0xff]
      %v288 = vld [vmem:[%s251 + $0x120] sm:$0xff]
      %v289 = vld [vmem:[%s251 + $0x128] sm:$0x1]
      %v290 = vld [vmem:[%s251 + $0x130] sm:$0xff]
      %v291 = vld [vmem:[%s251 + $0x138] sm:$0x1]
      %v292 = vld [vmem:[%s251 + $0x140] sm:$0xff]
      %v293 = vld [vmem:[%s251 + $0x148] sm:$0x1]
      %v294 = vld [vmem:[%s251 + $0x150] sm:$0xff]
      %v295 = vld [vmem:[%s251 + $0x158] sm:$0x1]
      %v296 = vld [vmem:[%s251 + $0x160] sm:$0xff]
      %v297 = vld [vmem:[%s251 + $0x168] sm:$0x1]
      %v298 = vld [vmem:[%s251 + $0x170] sm:$0xff]
      %v299 = vld [vmem:[%s251 + $0x178] sm:$0x1]
      %v300 = vld [vmem:[%s251 + $0x180] sm:$0xff]
      %v301 = vld [vmem:[%s251 + $0x188] sm:$0x1]
      %v302 = vld [vmem:[%s251 + $0x190] sm:$0xff]
      %v303 = vld [vmem:[%s251 + $0x198] sm:$0x1]
      %v304 = vld [vmem:[%s251 + $0x1b0] sm:$0xff]
      %v305 = vld [vmem:[%s251 + $0x1c0] sm:$0xff]
      %v306 = vld [vmem:[%s251 + $0x1d0] sm:$0xff]
      %v307 = vld [vmem:[%s251 + $0x1e0] sm:$0xff]
      %v308 = vld [vmem:[%s251 + $0x1f0] sm:$0xff]
      %v309 = vld [vmem:[%s251 + $0x200] sm:$0xff]
      %v310 = vld [vmem:[%s251 + $0x210] sm:$0xff]
      %v311 = vld [vmem:[%s251 + $0x220] sm:$0xff]
      %v312 = vld [vmem:[%s1] sm:$0xff]
      %v313 = vld [vmem:[%s1 + $0x8] sm:$0x1]
      %v314 = vld [vmem:[%s2] sm:$0x1]
      %v316 = vperm.slane %v314, 0
      %v318 = vperm.slane %v312, 0
      %v319 = vmul.f32 %v261, %v318
      %v320 = vmul.f32 %v263, %v318
      %v321 = vmul.f32 %v265, %v318
      %v322 = vmul.f32 %v267, %v318
      %v323 = vmul.f32 %v269, %v318
      %v324 = vmul.f32 %v271, %v318
      %v325 = vmul.f32 %v273, %v318
      %v326 = vmul.f32 %v275, %v318
      %v327 = vadd.f32 %v316, %v319
      %v328 = vadd.f32 %v316, %v320
      %v329 = vadd.f32 %v316, %v321
      %v330 = vadd.f32 %v316, %v322
      %v331 = vadd.f32 %v316, %v323
      %v332 = vadd.f32 %v316, %v324
      %v333 = vadd.f32 %v316, %v325
      %v334 = vadd.f32 %v316, %v326
      %v335 = vperm.slane %v312, 1
      %v336 = vmul.f32 %v279, %v335
      %v337 = vmul.f32 %v280, %v335
      %v338 = vmul.f32 %v281, %v335
      %v339 = vmul.f32 %v282, %v335
      %v340 = vmul.f32 %v283, %v335
      %v341 = vmul.f32 %v284, %v335
      %v342 = vmul.f32 %v285, %v335
      %v343 = vmul.f32 %v286, %v335
      %v344 = vadd.f32 %v327, %v336
      %v345 = vadd.f32 %v328, %v337
      %v346 = vadd.f32 %v329, %v338
      %v347 = vadd.f32 %v330, %v339
      %v348 = vadd.f32 %v331, %v340
      %v349 = vadd.f32 %v332, %v341
      %v350 = vadd.f32 %v333, %v342
      %v351 = vadd.f32 %v334, %v343
      %v352 = vperm.slane %v312, 2
      %v353 = vmul.f32 %v261, %v352
      %v354 = vmul.f32 %v262, %v352
      %v355 = vmul.f32 %v263, %v352
      %v356 = vmul.f32 %v264, %v352
      %v357 = vmul.f32 %v265, %v352
      %v358 = vmul.f32 %v266, %v352
      %v359 = vmul.f32 %v267, %v352
      %v360 = vmul.f32 %v268, %v352
      %v361 = vmul.f32 %v269, %v352
      %v362 = vmul.f32 %v270, %v352
      %v363 = vmul.f32 %v271, %v352
      %v364 = vmul.f32 %v272, %v352
      %v365 = vmul.f32 %v273, %v352
      %v366 = vmul.f32 %v274, %v352
      %v367 = vmul.f32 %v275, %v352
      %v368 = vmul.f32 %v276, %v352
      %vm385 = vcmask 1046528
      %v386 = vrot.slane %v353, 1
      %v387 = vrot.slane %v354, 1
      %v388 = vsel %vm385, %v386, %v387
      %v389 = vrot.slane %v355, 1
      %v390 = vrot.slane %v356, 1
      %v391 = vsel %vm385, %v389, %v390
      %v392 = vrot.slane %v357, 1
      %v393 = vrot.slane %v358, 1
      %v394 = vsel %vm385, %v392, %v393
      %v395 = vrot.slane %v359, 1
      %v396 = vrot.slane %v360, 1
      %v397 = vsel %vm385, %v395, %v396
      %v398 = vrot.slane %v361, 1
      %v399 = vrot.slane %v362, 1
      %v400 = vsel %vm385, %v398, %v399
      %v401 = vrot.slane %v363, 1
      %v402 = vrot.slane %v364, 1
      %v403 = vsel %vm385, %v401, %v402
      %v404 = vrot.slane %v365, 1
      %v405 = vrot.slane %v366, 1
      %v406 = vsel %vm385, %v404, %v405
      %v407 = vrot.slane %v367, 1
      %v408 = vrot.slane %v368, 1
      %v409 = vsel %vm385, %v407, %v408
      %v418 = vadd.f32 %v344, %v388
      %v419 = vadd.f32 %v345, %v391
      %v420 = vadd.f32 %v346, %v394
      %v421 = vadd.f32 %v347, %v397
      %v422 = vadd.f32 %v348, %v400
      %v423 = vadd.f32 %v349, %v403
      %v424 = vadd.f32 %v350, %v406
      %v425 = vadd.f32 %v351, %v409
      %v426 = vperm.slane %v312, 3
      %v427 = vmul.f32 %v288, %v426
      %v428 = vmul.f32 %v290, %v426
      %v429 = vmul.f32 %v292, %v426
      %v430 = vmul.f32 %v294, %v426
      %v431 = vmul.f32 %v296, %v426
      %v432 = vmul.f32 %v298, %v426
      %v433 = vmul.f32 %v300, %v426
      %v434 = vmul.f32 %v302, %v426
      %v435 = vadd.f32 %v418, %v427
      %v436 = vadd.f32 %v419, %v428
      %v437 = vadd.f32 %v420, %v429
      %v438 = vadd.f32 %v421, %v430
      %v439 = vadd.f32 %v422, %v431
      %v440 = vadd.f32 %v423, %v432
      %v441 = vadd.f32 %v424, %v433
      %v442 = vadd.f32 %v425, %v434
      %v443 = vperm.slane %v312, 4
      %v444 = vmul.f32 %v304, %v443
      %v445 = vmul.f32 %v305, %v443
      %v446 = vmul.f32 %v306, %v443
      %v447 = vmul.f32 %v307, %v443
      %v448 = vmul.f32 %v308, %v443
      %v449 = vmul.f32 %v309, %v443
      %v450 = vmul.f32 %v310, %v443
      %v451 = vmul.f32 %v311, %v443
      %v452 = vadd.f32 %v435, %v444
      %v453 = vadd.f32 %v436, %v445
      %v454 = vadd.f32 %v437, %v446
      %v455 = vadd.f32 %v438, %v447
      %v456 = vadd.f32 %v439, %v448
      %v457 = vadd.f32 %v440, %v449
      %v458 = vadd.f32 %v441, %v450
      %v459 = vadd.f32 %v442, %v451
      %v460 = vperm.slane %v312, 5
      %v461 = vmul.f32 %v288, %v460
      %v462 = vmul.f32 %v289, %v460
      %v463 = vmul.f32 %v290, %v460
      %v464 = vmul.f32 %v291, %v460
      %v465 = vmul.f32 %v292, %v460
      %v466 = vmul.f32 %v293, %v460
      %v467 = vmul.f32 %v294, %v460
      %v468 = vmul.f32 %v295, %v460
      %v469 = vmul.f32 %v296, %v460
      %v470 = vmul.f32 %v297, %v460
      %v471 = vmul.f32 %v298, %v460
      %v472 = vmul.f32 %v299, %v460
      %v473 = vmul.f32 %v300, %v460
      %v474 = vmul.f32 %v301, %v460
      %v475 = vmul.f32 %v302, %v460
      %v476 = vmul.f32 %v303, %v460
      %v493 = vrot.slane %v461, 1
      %v494 = vrot.slane %v462, 1
      %v495 = vsel %vm385, %v493, %v494
      %v496 = vrot.slane %v463, 1
      %v497 = vrot.slane %v464, 1
      %v498 = vsel %vm385, %v496, %v497
      %v499 = vrot.slane %v465, 1
      %v500 = vrot.slane %v466, 1
      %v501 = vsel %vm385, %v499, %v500
      %v502 = vrot.slane %v467, 1
      %v503 = vrot.slane %v468, 1
      %v504 = vsel %vm385, %v502, %v503
      %v505 = vrot.slane %v469, 1
      %v506 = vrot.slane %v470, 1
      %v507 = vsel %vm385, %v505, %v506
      %v508 = vrot.slane %v471, 1
      %v509 = vrot.slane %v472, 1
      %v510 = vsel %vm385, %v508, %v509
      %v511 = vrot.slane %v473, 1
      %v512 = vrot.slane %v474, 1
      %v513 = vsel %vm385, %v511, %v512
      %v514 = vrot.slane %v475, 1
      %v515 = vrot.slane %v476, 1
      %v516 = vsel %vm385, %v514, %v515
      %v525 = vadd.f32 %v452, %v495
      %v526 = vadd.f32 %v453, %v498
      %v527 = vadd.f32 %v454, %v501
      %v528 = vadd.f32 %v455, %v504
      %v529 = vadd.f32 %v456, %v507
      %v530 = vadd.f32 %v457, %v510
      %v531 = vadd.f32 %v458, %v513
      %v532 = vadd.f32 %v459, %v516
      %v533 = vperm.slane %v312, 6
      %v534 = vmul.f32 %v263, %v533
      %v535 = vmul.f32 %v265, %v533
      %v536 = vmul.f32 %v267, %v533
      %v537 = vmul.f32 %v269, %v533
      %v538 = vmul.f32 %v271, %v533
      %v539 = vmul.f32 %v273, %v533
      %v540 = vmul.f32 %v275, %v533
      %v541 = vmul.f32 %v277, %v533
      %v542 = vadd.f32 %v525, %v534
      %v543 = vadd.f32 %v526, %v535
      %v544 = vadd.f32 %v527, %v536
      %v545 = vadd.f32 %v528, %v537
      %v546 = vadd.f32 %v529, %v538
      %v547 = vadd.f32 %v530, %v539
      %v548 = vadd.f32 %v531, %v540
      %v549 = vadd.f32 %v532, %v541
      %v550 = vperm.slane %v312, 7
      %v551 = vmul.f32 %v280, %v550
      %v552 = vmul.f32 %v281, %v550
      %v553 = vmul.f32 %v282, %v550
      %v554 = vmul.f32 %v283, %v550
      %v555 = vmul.f32 %v284, %v550
      %v556 = vmul.f32 %v285, %v550
      %v557 = vmul.f32 %v286, %v550
      %v558 = vmul.f32 %v287, %v550
      %v559 = vadd.f32 %v542, %v551
      %v560 = vadd.f32 %v543, %v552
      %v561 = vadd.f32 %v544, %v553
      %v562 = vadd.f32 %v545, %v554
      %v563 = vadd.f32 %v546, %v555
      %v564 = vadd.f32 %v547, %v556
      %v565 = vadd.f32 %v548, %v557
      %v566 = vadd.f32 %v549, %v558
      %v567 = vperm.slane %v313, 0
      %v568 = vmul.f32 %v263, %v567
      %v569 = vmul.f32 %v264, %v567
      %v570 = vmul.f32 %v265, %v567
      %v571 = vmul.f32 %v266, %v567
      %v572 = vmul.f32 %v267, %v567
      %v573 = vmul.f32 %v268, %v567
      %v574 = vmul.f32 %v269, %v567
      %v575 = vmul.f32 %v270, %v567
      %v576 = vmul.f32 %v271, %v567
      %v577 = vmul.f32 %v272, %v567
      %v578 = vmul.f32 %v273, %v567
      %v579 = vmul.f32 %v274, %v567
      %v580 = vmul.f32 %v275, %v567
      %v581 = vmul.f32 %v276, %v567
      %v582 = vmul.f32 %v277, %v567
      %v583 = vmul.f32 %v278, %v567
      %v600 = vrot.slane %v568, 1
      %v601 = vrot.slane %v569, 1
      %v602 = vsel %vm385, %v600, %v601
      %v603 = vrot.slane %v570, 1
      %v604 = vrot.slane %v571, 1
      %v605 = vsel %vm385, %v603, %v604
      %v606 = vrot.slane %v572, 1
      %v607 = vrot.slane %v573, 1
      %v608 = vsel %vm385, %v606, %v607
      %v609 = vrot.slane %v574, 1
      %v610 = vrot.slane %v575, 1
      %v611 = vsel %vm385, %v609, %v610
      %v612 = vrot.slane %v576, 1
      %v613 = vrot.slane %v577, 1
      %v614 = vsel %vm385, %v612, %v613
      %v615 = vrot.slane %v578, 1
      %v616 = vrot.slane %v579, 1
      %v617 = vsel %vm385, %v615, %v616
      %v618 = vrot.slane %v580, 1
      %v619 = vrot.slane %v581, 1
      %v620 = vsel %vm385, %v618, %v619
      %v621 = vrot.slane %v582, 1
      %v622 = vrot.slane %v583, 1
      %v623 = vsel %vm385, %v621, %v622
      %v632 = vadd.f32 %v559, %v602
      %v633 = vadd.f32 %v560, %v605
      %v634 = vadd.f32 %v561, %v608
      %v635 = vadd.f32 %v562, %v611
      %v636 = vadd.f32 %v563, %v614
      %v637 = vadd.f32 %v564, %v617
      %v638 = vadd.f32 %v565, %v620
      %v639 = vadd.f32 %v566, %v623
      %v640 = vmax.f32 %v632, 0.0
      %v641 = vmax.f32 %v633, 0.0
      %v642 = vmax.f32 %v634, 0.0
      %v643 = vmax.f32 %v635, 0.0
      %v644 = vmax.f32 %v636, 0.0
      %v645 = vmax.f32 %v637, 0.0
      %v646 = vmax.f32 %v638, 0.0
      %v647 = vmax.f32 %v639, 0.0
      %v648 = vmin.f32 %v640, 6.0
      %v649 = vmin.f32 %v641, 6.0
      %v650 = vmin.f32 %v642, 6.0
      %v651 = vmin.f32 %v643, 6.0
      %v652 = vmin.f32 %v644, 6.0
      %v653 = vmin.f32 %v645, 6.0
      %v654 = vmin.f32 %v646, 6.0
      %v655 = vmin.f32 %v647, 6.0
      %v656 = vld [vmem:[%s3] sm:$0xf]
      %v657 = vld [vmem:[%s4] sm:$0x1]
      %v659 = vperm.slane %v657, 0
      %vm661 = vcmask 31744
      %v663 = vsel %vm661, %v648, 0
      %v666 = vsel %vm661, %v649, 0
      %v669 = vsel %vm661, %v650, 0
      %v672 = vsel %vm661, %v651, 0
      %v675 = vsel %vm661, %v652, 0
      %v678 = vsel %vm661, %v653, 0
      %v681 = vsel %vm661, %v654, 0
      %v684 = vsel %vm661, %v655, 0
      %vm686 = vcmask 1043456
      %v688 = vsel %vm686, %v656, 0
      %690 = vmatpush.msra.mxu0 0.0
      %691 = vmatpush.msra.mxu0 0.0
      %692 = vmatpush.msra.mxu0 0.0
      %693 = vmatpush.msra.mxu0 0.0
      %694 = vmatpush.msra.mxu0 0.0
      %695 = vmatpush.msra.mxu0 0.0
      %696 = vmatpush.msra.mxu0 0.0
      %697 = vmatpush.msra.mxu0 0.0
      %698 = vmatpush.msra.mxu0 0.0
      %699 = vmatpush.msra.mxu0 0.0
      %700 = vmatpush.msra.mxu0 0.0
      %701 = vmatpush.msra.mxu0 0.0
      %702 = vmatpush.msra.mxu0 0.0
      %703 = vmatpush.msra.mxu0 0.0
      %704 = vmatpush.msra.mxu0 0.0
      %705 = vmatpush.msra.mxu0 %v688
      %706 = vmatmul.f32.gmra.mxu0 %v663
      %v707 = vpop.f32.mrf.mxu0
      %v708 = vadd.f32 %v659, %v707
      %709 = vmatmul.f32.gmra.mxu0 %v666
      %v710 = vpop.f32.mrf.mxu0
      %v711 = vadd.f32 %v659, %v710
      %712 = vmatmul.f32.gmra.mxu0 %v669
      %v713 = vpop.f32.mrf.mxu0
      %v714 = vadd.f32 %v659, %v713
      %715 = vmatmul.f32.gmra.mxu0 %v672
      %v716 = vpop.f32.mrf.mxu0
      %v717 = vadd.f32 %v659, %v716
      %718 = vmatmul.f32.gmra.mxu0 %v675
      %v719 = vpop.f32.mrf.mxu0
      %v720 = vadd.f32 %v659, %v719
      %721 = vmatmul.f32.gmra.mxu0 %v678
      %v722 = vpop.f32.mrf.mxu0
      %v723 = vadd.f32 %v659, %v722
      %724 = vmatmul.f32.gmra.mxu0 %v681
      %v725 = vpop.f32.mrf.mxu0
      %v726 = vadd.f32 %v659, %v725
      %727 = vmatmul.f32.gmra.mxu0 %v684
      %v728 = vpop.f32.mrf.mxu0
      %v729 = vadd.f32 %v659, %v728
      %730 = vdwg.mxu0
      %v731 = vmax.f32 %v708, 0.0
      %v732 = vmax.f32 %v711, 0.0
      %v733 = vmax.f32 %v714, 0.0
      %v734 = vmax.f32 %v717, 0.0
      %v735 = vmax.f32 %v720, 0.0
      %v736 = vmax.f32 %v723, 0.0
      %v737 = vmax.f32 %v726, 0.0
      %v738 = vmax.f32 %v729, 0.0
      %v739 = vmin.f32 %v731, 6.0
      %v740 = vmin.f32 %v732, 6.0
      %v741 = vmin.f32 %v733, 6.0
      %v742 = vmin.f32 %v734, 6.0
      %v743 = vmin.f32 %v735, 6.0
      %v744 = vmin.f32 %v736, 6.0
      %v745 = vmin.f32 %v737, 6.0
      %v746 = vmin.f32 %v738, 6.0
      %747 = vst [vmem:[%s260] sm:$0xff] %v739
      %748 = vst [vmem:[%s260 + $0x8] sm:$0xff] %v740
      %749 = vst [vmem:[%s260 + $0x10] sm:$0xff] %v741
      %750 = vst [vmem:[%s260 + $0x18] sm:$0xff] %v742
      %751 = vst [vmem:[%s260 + $0x20] sm:$0xff] %v743
      %752 = vst [vmem:[%s260 + $0x28] sm:$0xff] %v744
      %753 = vst [vmem:[%s260 + $0x30] sm:$0xff] %v745
      %754 = vst [vmem:[%s260 + $0x38] sm:$0xff] %v746
      %p755 = scmp.lt.s32.totalorder %s20, 1
      %s756 = scalar_select %p755, %s20, 1
      %p757 = scmp.lt.s32.totalorder %s21, 0
      %s758 = scalar_select %p757, %s21, 0
      %s759 = smul.addr %s758, 8
      %s760 = smul.addr %s756, 8
      %s761 = sadd.s32 %s759, %s760
      %s762 = smul.addr %s761, 8
      %s763 = scalar_lea.vmem %s5, %s762
      // Predicated region
      $region41: #{depthwise_separable_conv.1} parent=39 // pred_check
        %p764 = pneg %p160
      $region42: #{depthwise_separable_conv.1} parent=39 // pred_check_branch
        %766 = sbr.rel (%p764) target = $region44
      $region43: #{depthwise_separable_conv.1} parent=39 // pred_region
        _
      $region44: #{depthwise_separable_conv.1} parent=39 // pred_fallthru
        _
    $region40: #{depthwise_separable_conv.1} parent=5 // pred_fallthru
      _
    %p767 = scmp.le.s32.totalorder 2, %s11
    // Predicated region
    $region45: #{depthwise_separable_conv.1} parent=5 // pred_check
      %p768 = pneg %p767
    $region46: #{depthwise_separable_conv.1} parent=5 // pred_check_branch
      %770 = sbr.rel (%p768) target = $region48
    $region47: #{depthwise_separable_conv.1} parent=5 // pred_region
      %s771 = ssub.s32 %s11, 2
      // Predicated region
      $region49: #{depthwise_separable_conv.1} parent=47 // pred_check
        %p772 = pneg %p166
      $region50: #{depthwise_separable_conv.1} parent=47 // pred_check_branch
        %774 = sbr.rel (%p772) target = $region52
      $region51: #{depthwise_separable_conv.1} parent=47 // pred_region
        %p775 = scmp.lt.s32.totalorder %s22, 1
        %s776 = scalar_select %p775, %s22, 1
        %p777 = scmp.lt.s32.totalorder %s23, 0
        %s778 = scalar_select %p777, %s23, 0
        %s779 = smul.addr %s778, 8
        %s780 = smul.addr %s776, 8
        %s781 = sadd.s32 %s779, %s780
        %s782 = smul.addr %s781, 8
        %s783 = scalar_lea.vmem %s5, %s782
      $region52: #{depthwise_separable_conv.1} parent=47 // pred_fallthru
        _
    $region48: #{depthwise_separable_conv.1} parent=5 // pred_fallthru
      _
  $region6: #{depthwise_separable_conv.1} parent=0 // loop_footer
    %s15 = sadd.s32 1, %s11
  $region7: #{depthwise_separable_conv.1} parent=0 // loop_footer_branch
    %10 = sbr.rel target = $region3
  $region8: #{depthwise_separable_conv.1} parent=0 // loop_exit
    _

</llo_original>
